<compile_context>
chip_gen: v7x
topology: tpu7x:2x2x1
jax: 0.10.0
libtpu: 0.0.40
codegen_flags: <defaults>
</compile_context>

<pallas_src>
import functools

import jax
import jax.numpy as jnp
from jax.experimental import pallas as pl
from jax.experimental.pallas import tpu as pltpu


def _ibot_patch_loss_kernel(s_ref, t_ref, loss_ref,
                            m_run, l_run, ts_run, tsum_run, *, inv_temp):
    # s_ref, t_ref : (1, TILE_N, TILE_D) blocks in native input dtype
    # loss_ref     : (1, TILE_N, 1) f32 per-token loss (written at last D tile)
    # scratch      : (TILE_N, 1) f32 running max / exp-sum / sum(t*s') / sum(t)
    d_idx = pl.program_id(2)

    @pl.when(d_idx == 0)
    def _():
        m_run[...] = jnp.full(m_run.shape, -jnp.inf, dtype=m_run.dtype)
        l_run[...] = jnp.zeros_like(l_run)
        ts_run[...] = jnp.zeros_like(ts_run)
        tsum_run[...] = jnp.zeros_like(tsum_run)

    s = s_ref[0].astype(jnp.float32) * inv_temp          # (TILE_N, TILE_D)
    t = t_ref[0].astype(jnp.float32)                     # (TILE_N, TILE_D)

    # Online log-sum-exp over the D axis.
    chunk_max = jnp.max(s, axis=-1, keepdims=True)       # (TILE_N, 1)
    m_new = jnp.maximum(m_run[...], chunk_max)
    alpha = jnp.exp(m_run[...] - m_new)
    l_run[...] = alpha * l_run[...] + jnp.sum(jnp.exp(s - m_new),
                                              axis=-1, keepdims=True)
    m_run[...] = m_new

    # sum_D(t * s') and sum_D(t): no rescaling needed (not max-shifted).
    ts_run[...] = ts_run[...] + jnp.sum(t * s, axis=-1, keepdims=True)
    tsum_run[...] = tsum_run[...] + jnp.sum(t, axis=-1, keepdims=True)

    @pl.when(d_idx == pl.num_programs(2) - 1)
    def _():
        # loss_tok = sum_D t*log_softmax(s') = sum_D(t*s') - lse * sum_D(t)
        lse = m_run[...] + jnp.log(l_run[...])            # (TILE_N, 1)
        loss_ref[0] = ts_run[...] - lse * tsum_run[...]   # (TILE_N, 1)


def _vmem_limit_bytes():
    """Per-generation scoped VMEM limit with a safe fallback."""
    cap = 64 * 1024 * 1024  # conservative default = v7x per-core VMEM
    try:
        info = pltpu.get_tpu_info()
        cap = int(getattr(info, "vmem_capacity_bytes", cap))
    except Exception:
        pass
    # v5e/v6e (128 MiB) -> 96 MiB limit; v7x (64 MiB) -> 48 MiB limit.
    return min(cap * 3 // 4, 96 * 1024 * 1024)


def _choose_tiles(N, D, itemsize, block_budget_bytes):
    """Pick (TILE_N, TILE_D) so blocks + f32 temporaries fit the budget."""
    # D tile: a 128-lane multiple dividing D (capped), else whole D.
    d_cap = 2048
    if D % 128 == 0 and D > d_cap:
        tile_d = 128
        for cand in range(d_cap, 0, -128):
            if D % cand == 0:
                tile_d = cand
                break
    else:
        tile_d = D
    # Per (token-row x tile_d): 2 inputs x 2 pipeline buffers x itemsize
    # plus ~5 float32 in-kernel temporaries (s, t, exp, products).
    bytes_per_row = (4 * itemsize + 5 * 4) * tile_d
    max_rows = max(16, block_budget_bytes // max(bytes_per_row, 1))
    tile_n = (max_rows // 16) * 16           # sublane-friendly for bf16 & f32
    tile_n = max(16, min(tile_n, 1024))
    n_ceil16 = ((N + 15) // 16) * 16         # never bigger than padded N
    tile_n = min(tile_n, n_ceil16)
    return int(tile_n), int(tile_d)


def ibot_patch_loss(student_patch_tokens, teacher_patch_tokens,
                    student_masks_flat, student_temp=0.1):
    """Pallas implementation of iBOTPatchLoss.forward."""
    B, N, D = student_patch_tokens.shape
    itemsize = max(jnp.dtype(student_patch_tokens.dtype).itemsize,
                   jnp.dtype(teacher_patch_tokens.dtype).itemsize)

    vmem_limit = _vmem_limit_bytes()
    tile_n, tile_d = _choose_tiles(N, D, itemsize, vmem_limit // 2)

    n_tiles = (N + tile_n - 1) // tile_n
    n_pad = n_tiles * tile_n
    d_tiles = D // tile_d

    s = student_patch_tokens
    t = teacher_patch_tokens
    if n_pad != N:
        # Pad with zero token rows: their loss is exactly 0 and they are
        # excluded by the mask in the glue below, so the result is exact.
        pad = ((0, 0), (0, n_pad - N), (0, 0))
        s = jnp.pad(s, pad)
        t = jnp.pad(t, pad)

    kernel = functools.partial(_ibot_patch_loss_kernel,
                               inv_temp=float(1.0 / student_temp))

    loss_tok = pl.pallas_call(
        kernel,
        out_shape=jax.ShapeDtypeStruct((B, n_pad, 1), jnp.float32),
        grid_spec=pltpu.PrefetchScalarGridSpec(
            num_scalar_prefetch=0,
            grid=(B, n_tiles, d_tiles),
            in_specs=[
                pl.BlockSpec((1, tile_n, tile_d), lambda b, n, d: (b, n, d)),
                pl.BlockSpec((1, tile_n, tile_d), lambda b, n, d: (b, n, d)),
            ],
            out_specs=pl.BlockSpec((1, tile_n, 1), lambda b, n, d: (b, n, 0)),
            scratch_shapes=[pltpu.VMEM((tile_n, 1), jnp.float32)] * 4,
        ),
        compiler_params=pltpu.CompilerParams(
            dimension_semantics=("parallel", "parallel", "arbitrary"),
            vmem_limit_bytes=int(vmem_limit),
        ),
    )(s, t)

    # Masked per-batch mean + negated batch mean: tiny plain-JAX glue.
    loss_tok = loss_tok[:, :N, 0]                               # (B, N)
    m = student_masks_flat.astype(jnp.float32)                  # (B, N)
    loss_b = jnp.sum(loss_tok * m, axis=-1) / jnp.maximum(jnp.sum(m, axis=-1),
                                                          1.0)
    return -jnp.mean(loss_b)


def _reference(student, teacher, masks, student_temp=0.1):
    s = student.astype(jnp.float32) / student_temp
    t = teacher.astype(jnp.float32)
    log_probs = jax.nn.log_softmax(s, axis=-1)
    loss = jnp.sum(t * log_probs, axis=-1)                      # (B, N)
    m = masks.astype(jnp.float32)
    loss = jnp.sum(loss * m, axis=-1) / jnp.maximum(jnp.sum(m, axis=-1), 1.0)
    return -jnp.mean(loss)


if __name__ == "__main__":
    root = jax.random.PRNGKey(0)

    def make_inputs(key, B, N, D, dtype):
        k_s, k_t, k_m = jax.random.split(key, 3)
        student = jax.random.normal(k_s, (B, N, D), dtype=jnp.float32)
        teacher_logits = jax.random.normal(k_t, (B, N, D), dtype=jnp.float32)
        teacher = jax.nn.softmax(teacher_logits / 0.04, axis=-1)
        masks = jax.random.bernoulli(k_m, p=0.5, shape=(B, N))   # bool (B, N)
        return student.astype(dtype), teacher.astype(dtype), masks

    k0, k1, k2 = jax.random.split(root, 3)

    # 1) Small shape consistent with the module: B=2 images, N=8 patch
    #    tokens, D=32 = patch_out_dim, f32.
    s, t, m = make_inputs(k0, 2, 8, 32, jnp.float32)
    out = jax.block_until_ready(ibot_patch_loss(s, t, m, student_temp=0.1))
    ref = _reference(s, t, m, student_temp=0.1)
    assert jnp.allclose(out, ref, rtol=1e-5, atol=1e-5), (out, ref)

    # 2) N not divisible by the tile (exercises the zero-mask padding path).
    s, t, m = make_inputs(k1, 2, 13, 256, jnp.float32)
    out = jax.block_until_ready(ibot_patch_loss(s, t, m, student_temp=0.1))
    ref = _reference(s, t, m, student_temp=0.1)
    assert jnp.allclose(out, ref, rtol=1e-5, atol=1e-5), (out, ref)

    # 3) bf16 inputs + D streamed over multiple grid tiles (online LSE path).
    s, t, m = make_inputs(k2, 2, 12, 4096, jnp.bfloat16)
    out = jax.block_until_ready(ibot_patch_loss(s, t, m, student_temp=0.1))
    ref = _reference(s, t, m, student_temp=0.1)
    assert jnp.allclose(out, ref, rtol=1e-2, atol=1e-2), (out, ref)

    print("KERNEL_OK")
</pallas_src>

<mosaic_0001>
module attributes {stable_mosaic.version = 11 : i64} {
  func.func @_ibot_patch_loss_kernel(%arg0: i32, %arg1: i32, %arg2: i32, %arg3: memref<1x16x32xf32, #tpu.memory_space<vmem>>, %arg4: memref<1x16x32xf32, #tpu.memory_space<vmem>>, %arg5: memref<1x16x1xf32, #tpu.memory_space<vmem>>, %arg6: memref<16x1xf32, #tpu.memory_space<vmem>>, %arg7: memref<16x1xf32, #tpu.memory_space<vmem>>, %arg8: memref<16x1xf32, #tpu.memory_space<vmem>>, %arg9: memref<16x1xf32, #tpu.memory_space<vmem>>) attributes {dimension_semantics = [#tpu.dimension_semantics<parallel>, #tpu.dimension_semantics<parallel>, #tpu.dimension_semantics<arbitrary>], iteration_bounds = array<i64: 2, 1, 1>, scalar_prefetch = 0 : i64, scratch_operands = 4 : i64, tpu.core_type = #tpu.core_type<tc>, window_params = [{transform_indices = @transform_0, window_bounds = array<i64: 1, 16, 32>}, {transform_indices = @transform_1, window_bounds = array<i64: 1, 16, 32>}, {transform_indices = @transform_2, window_bounds = array<i64: 1, 16, 1>}]} {
    %c0_i32 = arith.constant 0 : i32
    %0 = arith.cmpi eq, %arg2, %c0_i32 : i32
    %1 = arith.extui %0 : i1 to i32
    %c0_i32_0 = arith.constant 0 : i32
    %2 = arith.cmpi ne, %1, %c0_i32_0 : i32
    scf.if %2 {
      %cst_30 = arith.constant 0xFF800000 : f32
      %40 = vector.broadcast %cst_30 : f32 to vector<16x1xf32>
      %c0_31 = arith.constant 0 : index
      %c0_32 = arith.constant 0 : index
      %41 = vector.load %arg6[%c0_31, %c0_32] : memref<16x1xf32, #tpu.memory_space<vmem>>, vector<16x1xf32>
      tpu.vector_store %arg6[%c0_31, %c0_32], %40 {strides = array<i32>} : memref<16x1xf32, #tpu.memory_space<vmem>>, vector<16x1xf32>,
      %cst_33 = arith.constant 0.000000e+00 : f32
      %42 = vector.broadcast %cst_33 : f32 to vector<16x1xf32>
      %c0_34 = arith.constant 0 : index
      %c0_35 = arith.constant 0 : index
      %43 = vector.load %arg7[%c0_34, %c0_35] : memref<16x1xf32, #tpu.memory_space<vmem>>, vector<16x1xf32>
      tpu.vector_store %arg7[%c0_34, %c0_35], %42 {strides = array<i32>} : memref<16x1xf32, #tpu.memory_space<vmem>>, vector<16x1xf32>,
      %cst_36 = arith.constant 0.000000e+00 : f32
      %44 = vector.broadcast %cst_36 : f32 to vector<16x1xf32>
      %c0_37 = arith.constant 0 : index
      %c0_38 = arith.constant 0 : index
      %45 = vector.load %arg8[%c0_37, %c0_38] : memref<16x1xf32, #tpu.memory_space<vmem>>, vector<16x1xf32>
      tpu.vector_store %arg8[%c0_37, %c0_38], %44 {strides = array<i32>} : memref<16x1xf32, #tpu.memory_space<vmem>>, vector<16x1xf32>,
      %cst_39 = arith.constant 0.000000e+00 : f32
      %46 = vector.broadcast %cst_39 : f32 to vector<16x1xf32>
      %c0_40 = arith.constant 0 : index
      %c0_41 = arith.constant 0 : index
      %47 = vector.load %arg9[%c0_40, %c0_41] : memref<16x1xf32, #tpu.memory_space<vmem>>, vector<16x1xf32>
      tpu.vector_store %arg9[%c0_40, %c0_41], %46 {strides = array<i32>} : memref<16x1xf32, #tpu.memory_space<vmem>>, vector<16x1xf32>,
    } else {
    }
    %c0 = arith.constant 0 : index
    %c0_1 = arith.constant 0 : index
    %c0_2 = arith.constant 0 : index
    %3 = vector.load %arg3[%c0, %c0_1, %c0_2] : memref<1x16x32xf32, #tpu.memory_space<vmem>>, vector<1x16x32xf32>
    %4 = vector.shape_cast %3 : vector<1x16x32xf32> to vector<16x32xf32>
    %cst = arith.constant 1.000000e+01 : f32
    %5 = vector.broadcast %cst : f32 to vector<16x32xf32>
    %6 = arith.mulf %4, %5 : vector<16x32xf32>
    %c0_3 = arith.constant 0 : index
    %c0_4 = arith.constant 0 : index
    %c0_5 = arith.constant 0 : index
    %7 = vector.load %arg4[%c0_3, %c0_4, %c0_5] : memref<1x16x32xf32, #tpu.memory_space<vmem>>, vector<1x16x32xf32>
    %8 = vector.shape_cast %7 : vector<1x16x32xf32> to vector<16x32xf32>
    %cst_6 = arith.constant dense<0xFF800000> : vector<16xf32>
    %9 = vector.multi_reduction <maximumf>, %6, %cst_6 [1] : vector<16x32xf32> to vector<16xf32>
    %10 = vector.shape_cast %9 : vector<16xf32> to vector<16x1xf32>
    %c0_7 = arith.constant 0 : index
    %c0_8 = arith.constant 0 : index
    %11 = vector.load %arg6[%c0_7, %c0_8] : memref<16x1xf32, #tpu.memory_space<vmem>>, vector<16x1xf32>
    %12 = arith.maximumf %11, %10 : vector<16x1xf32>
    %c0_9 = arith.constant 0 : index
    %c0_10 = arith.constant 0 : index
    %13 = vector.load %arg6[%c0_9, %c0_10] : memref<16x1xf32, #tpu.memory_space<vmem>>, vector<16x1xf32>
    %14 = arith.subf %13, %12 : vector<16x1xf32>
    %15 = math.exp %14 : vector<16x1xf32>
    %c0_11 = arith.constant 0 : index
    %c0_12 = arith.constant 0 : index
    %16 = vector.load %arg7[%c0_11, %c0_12] : memref<16x1xf32, #tpu.memory_space<vmem>>, vector<16x1xf32>
    %17 = arith.mulf %15, %16 : vector<16x1xf32>
    %18 = vector.broadcast %12 : vector<16x1xf32> to vector<16x32xf32>
    %19 = arith.subf %6, %18 : vector<16x32xf32>
    %20 = math.exp %19 : vector<16x32xf32>
    %cst_13 = arith.constant dense<0.000000e+00> : vector<16xf32>
    %21 = vector.multi_reduction <add>, %20, %cst_13 [1] : vector<16x32xf32> to vector<16xf32>
    %22 = vector.shape_cast %21 : vector<16xf32> to vector<16x1xf32>
    %23 = arith.addf %17, %22 : vector<16x1xf32>
    %c0_14 = arith.constant 0 : index
    %c0_15 = arith.constant 0 : index
    %24 = vector.load %arg7[%c0_14, %c0_15] : memref<16x1xf32, #tpu.memory_space<vmem>>, vector<16x1xf32>
    tpu.vector_store %arg7[%c0_14, %c0_15], %23 {strides = array<i32>} : memref<16x1xf32, #tpu.memory_space<vmem>>, vector<16x1xf32>,
    %c0_16 = arith.constant 0 : index
    %c0_17 = arith.constant 0 : index
    %25 = vector.load %arg6[%c0_16, %c0_17] : memref<16x1xf32, #tpu.memory_space<vmem>>, vector<16x1xf32>
    tpu.vector_store %arg6[%c0_16, %c0_17], %12 {strides = array<i32>} : memref<16x1xf32, #tpu.memory_space<vmem>>, vector<16x1xf32>,
    %c0_18 = arith.constant 0 : index
    %c0_19 = arith.constant 0 : index
    %26 = vector.load %arg8[%c0_18, %c0_19] : memref<16x1xf32, #tpu.memory_space<vmem>>, vector<16x1xf32>
    %27 = arith.mulf %8, %6 : vector<16x32xf32>
    %cst_20 = arith.constant dense<0.000000e+00> : vector<16xf32>
    %28 = vector.multi_reduction <add>, %27, %cst_20 [1] : vector<16x32xf32> to vector<16xf32>
    %29 = vector.shape_cast %28 : vector<16xf32> to vector<16x1xf32>
    %30 = arith.addf %26, %29 : vector<16x1xf32>
    %c0_21 = arith.constant 0 : index
    %c0_22 = arith.constant 0 : index
    %31 = vector.load %arg8[%c0_21, %c0_22] : memref<16x1xf32, #tpu.memory_space<vmem>>, vector<16x1xf32>
    tpu.vector_store %arg8[%c0_21, %c0_22], %30 {strides = array<i32>} : memref<16x1xf32, #tpu.memory_space<vmem>>, vector<16x1xf32>,
    %c0_23 = arith.constant 0 : index
    %c0_24 = arith.constant 0 : index
    %32 = vector.load %arg9[%c0_23, %c0_24] : memref<16x1xf32, #tpu.memory_space<vmem>>, vector<16x1xf32>
    %cst_25 = arith.constant dense<0.000000e+00> : vector<16xf32>
    %33 = vector.multi_reduction <add>, %8, %cst_25 [1] : vector<16x32xf32> to vector<16xf32>
    %34 = vector.shape_cast %33 : vector<16xf32> to vector<16x1xf32>
    %35 = arith.addf %32, %34 : vector<16x1xf32>
    %c0_26 = arith.constant 0 : index
    %c0_27 = arith.constant 0 : index
    %36 = vector.load %arg9[%c0_26, %c0_27] : memref<16x1xf32, #tpu.memory_space<vmem>>, vector<16x1xf32>
    tpu.vector_store %arg9[%c0_26, %c0_27], %35 {strides = array<i32>} : memref<16x1xf32, #tpu.memory_space<vmem>>, vector<16x1xf32>,
    %c0_i32_28 = arith.constant 0 : i32
    %37 = arith.cmpi eq, %arg2, %c0_i32_28 : i32
    %38 = arith.extui %37 : i1 to i32
    %c0_i32_29 = arith.constant 0 : i32
    %39 = arith.cmpi ne, %38, %c0_i32_29 : i32
    scf.if %39 {
      %c0_30 = arith.constant 0 : index
      %c0_31 = arith.constant 0 : index
      %40 = vector.load %arg6[%c0_30, %c0_31] : memref<16x1xf32, #tpu.memory_space<vmem>>, vector<16x1xf32>
      %c0_32 = arith.constant 0 : index
      %c0_33 = arith.constant 0 : index
      %41 = vector.load %arg7[%c0_32, %c0_33] : memref<16x1xf32, #tpu.memory_space<vmem>>, vector<16x1xf32>
      %42 = math.log %41 : vector<16x1xf32>
      %43 = arith.addf %40, %42 : vector<16x1xf32>
      %c0_34 = arith.constant 0 : index
      %c0_35 = arith.constant 0 : index
      %44 = vector.load %arg8[%c0_34, %c0_35] : memref<16x1xf32, #tpu.memory_space<vmem>>, vector<16x1xf32>
      %c0_36 = arith.constant 0 : index
      %c0_37 = arith.constant 0 : index
      %45 = vector.load %arg9[%c0_36, %c0_37] : memref<16x1xf32, #tpu.memory_space<vmem>>, vector<16x1xf32>
      %46 = arith.mulf %43, %45 : vector<16x1xf32>
      %47 = arith.subf %44, %46 : vector<16x1xf32>
      %c0_38 = arith.constant 0 : index
      %c0_39 = arith.constant 0 : index
      %c0_40 = arith.constant 0 : index
      %48 = vector.load %arg5[%c0_38, %c0_39, %c0_40] : memref<1x16x1xf32, #tpu.memory_space<vmem>>, vector<1x16x1xf32>
      %49 = vector.shape_cast %48 : vector<1x16x1xf32> to vector<16x1xf32>
      %50 = vector.shape_cast %47 : vector<16x1xf32> to vector<1x16x1xf32>
      tpu.vector_store %arg5[%c0_38, %c0_39, %c0_40], %50 {strides = array<i32>} : memref<1x16x1xf32, #tpu.memory_space<vmem>>, vector<1x16x1xf32>,
    } else {
    }
    return
  }
  func.func @transform_0(%arg0: i32, %arg1: i32, %arg2: i32) -> (i32, i32, i32) {
    %c0_i32 = arith.constant 0 : i32
    return %arg0, %arg1, %arg2 : i32, i32, i32
  }
  func.func @transform_1(%arg0: i32, %arg1: i32, %arg2: i32) -> (i32, i32, i32) {
    %c0_i32 = arith.constant 0 : i32
    return %arg0, %arg1, %arg2 : i32, i32, i32
  }
  func.func @transform_2(%arg0: i32, %arg1: i32, %arg2: i32) -> (i32, i32, i32) {
    %c0_i32 = arith.constant 0 : i32
    %c0_i32_0 = arith.constant 0 : i32
    return %arg0, %arg1, %c0_i32 : i32, i32, i32
  }
}

</mosaic_0001>

<llo_original>
// kernel: tpu_custom_call.1
$region0: #{tpu_custom_call.1}
  #allocation0 [shape = 'u32[]', space=smem, size = 0x4, offset = 0x4, fixed_abs, tag = 'smem constant byte address 0x4 - core index']
  #allocation1 [shape = 'u32[144,128]{1,0:T(1,128)}', space=vmem, size = 0x12000, scoped, tag = 'internal scratch']
  #allocation2 [shape = 'f32[16,1]{1,0:T(8,128)}', space=vmem, size = 0x2000, scoped, tag = 'scratch operand']
  #allocation3 [shape = 'f32[16,1]{1,0:T(8,128)}', space=vmem, size = 0x2000, scoped, tag = 'scratch operand']
  #allocation4 [shape = 'f32[16,1]{1,0:T(8,128)}', space=vmem, size = 0x2000, scoped, tag = 'scratch operand']
  #allocation5 [shape = 'f32[16,1]{1,0:T(8,128)}', space=vmem, size = 0x2000, scoped, tag = 'scratch operand']
  %s0 = inlined_call_operand.hbm [shape: f32[2,16,32], index: 0, kind: input, shape index: {}]
  %s1 = inlined_call_operand.hbm [shape: f32[2,16,32], index: 1, kind: input, shape index: {}]
  %s2 = inlined_call_operand.vmem [shape: f32[2,16,1], index: 2, kind: output, shape index: {}]
  %s3 = sld [smem:[#allocation0]]
  $region57: #{tpu_custom_call.1} parent=0
    _
  %s5 = ssub.s32 1, %s3
  %s6 = scalar_select 0, %s5, %s3
  $region1: #{tpu_custom_call.1} parent=0
    #allocation6 [shape = 'u8[16384]{0}', space=vmem, size = 0x4000, scoped, tag = 'input window, operand 0']
    #allocation7 [shape = 's32[2]{0}', space=sflag, size = 0x8, scoped, tag = 'scoped memory for tpu_custom_call.1']
    #allocation8 [shape = 'u8[16384]{0}', space=vmem, size = 0x4000, scoped, tag = 'input window, operand 1']
    #allocation9 [shape = 's32[2]{0}', space=sflag, size = 0x8, scoped, tag = 'scoped memory for tpu_custom_call.1']
    %7 = vsyncpa [#allocation7], 0
    %s8 = scalar_lea.sflag [#allocation7], 1
    %9 = vsyncpa %s8, 0
    %10 = vsyncpa [#allocation9], 0
    %s11 = scalar_lea.sflag [#allocation9], 1
    %12 = vsyncpa %s11, 0
    loop: start=0, step=1, limit=4
    $region2: #{tpu_custom_call.1} parent=1 // loop_pre_header
      _
    $region3: #{tpu_custom_call.1} parent=1 // loop_header
      %s14 = sphi 0, %s18
      %p15 = scmp.ge.s32.totalorder %s14, 4
      %s21 = sphi 0, %s40
      %s22 = sphi 0, %s36
      %s23 = sphi 0, %s32
      %s24 = sphi 0, %s21
      %s25 = sphi 0, %s22
      %s26 = sphi 0, %s23
      %s27 = sphi 0, %s24
      %s28 = sphi 0, %s25
      %s29 = sphi 0, %s26
      %s47 = sphi 0, %s49
      %s50 = sphi 0, %s47
      %s51 = sphi 0, %s50
      %s67 = sphi 0, %s51
      %s77 = sphi 0, %s79
      %s80 = sphi 0, %s77
      %s81 = sphi 0, %s80
      %s97 = sphi 0, %s81
      %s105 = sphi 0, %s107
      %s108 = sphi 0, %s105
      %s109 = sphi 0, %s108
      %s125 = sphi 0, %s109
    $region4: #{tpu_custom_call.1} parent=1 // loop_header_branch
      %17 = sbr.rel (%p15) target = $region8
    $region5: #{tpu_custom_call.1} parent=1 // loop_body
      %s19 = ssub.s32 %s14, 1
      %s20 = ssub.s32 %s14, 2
      %s30 = sadd.s32 1, %s23
      %p31 = scmp.ge.s32.totalorder %s30, 1
      %s32 = scalar_select %p31, 0, %s30
      %s33 = sadd.s32 1, %s22
      %s34 = scalar_select %p31, %s33, %s22
      %p35 = scmp.ge.s32.totalorder %s34, 1
      %s36 = scalar_select %p35, 0, %s34
      %s37 = sadd.s32 1, %s21
      %s38 = scalar_select %p35, %s37, %s21
      %p39 = scmp.ge.s32.totalorder %s38, 2
      %s40 = scalar_select %p39, 0, %s38
      %s41 = ssub.s32 %s21, %s40
      %s42 = ssub.s32 %s22, %s36
      %s43 = sor.u32 %s41, %s42
      %s44 = ssub.s32 %s23, %s32
      %s45 = sor.u32 %s43, %s44
      %p46 = scmp.eq.s32.totalorder %s45, 0
      %s48 = sadd.s32 %s47, 1
      %s49 = scalar_select %p46, %s47, %s48
      %p52 = pneg %p46
      %p53 = scmp.eq.s32.totalorder %s14, 1
      %p54 = por %p52, %p53
      %p55 = scmp.ne.s32.totalorder %s47, %s50
      %p56 = scmp.eq.s32.totalorder %s14, 0
      %p57 = por %p55, %p56
      %p58 = scmp.ne.s32.totalorder %s47, %s50
      %p59 = scmp.eq.s32.totalorder %s19, 1
      %p60 = por %p58, %p59
      %p61 = scmp.ne.s32.totalorder %s50, %s51
      %p62 = scmp.eq.s32.totalorder %s19, 0
      %p63 = por %p61, %p62
      %p64 = scmp.ne.s32.totalorder %s50, %s51
      %p65 = scmp.eq.s32.totalorder %s20, 1
      %p66 = por %p64, %p65
      %p68 = scmp.ne.s32.totalorder %s51, %s67
      %p69 = scmp.eq.s32.totalorder %s20, 0
      %p70 = por %p68, %p69
      %s71 = ssub.s32 %s21, %s40
      %s72 = ssub.s32 %s22, %s36
      %s73 = sor.u32 %s71, %s72
      %s74 = ssub.s32 %s23, %s32
      %s75 = sor.u32 %s73, %s74
      %p76 = scmp.eq.s32.totalorder %s75, 0
      %s78 = sadd.s32 %s77, 1
      %s79 = scalar_select %p76, %s77, %s78
      %p82 = pneg %p76
      %p83 = scmp.eq.s32.totalorder %s14, 1
      %p84 = por %p82, %p83
      %p85 = scmp.ne.s32.totalorder %s77, %s80
      %p86 = scmp.eq.s32.totalorder %s14, 0
      %p87 = por %p85, %p86
      %p88 = scmp.ne.s32.totalorder %s77, %s80
      %p89 = scmp.eq.s32.totalorder %s19, 1
      %p90 = por %p88, %p89
      %p91 = scmp.ne.s32.totalorder %s80, %s81
      %p92 = scmp.eq.s32.totalorder %s19, 0
      %p93 = por %p91, %p92
      %p94 = scmp.ne.s32.totalorder %s80, %s81
      %p95 = scmp.eq.s32.totalorder %s20, 1
      %p96 = por %p94, %p95
      %p98 = scmp.ne.s32.totalorder %s81, %s97
      %p99 = scmp.eq.s32.totalorder %s20, 0
      %p100 = por %p98, %p99
      %s101 = ssub.s32 %s21, %s40
      %s102 = ssub.s32 %s22, %s36
      %s103 = sor.u32 %s101, %s102
      %p104 = scmp.eq.s32.totalorder %s103, 0
      %s106 = sadd.s32 %s105, 1
      %s107 = scalar_select %p104, %s105, %s106
      %p110 = pneg %p104
      %p111 = scmp.eq.s32.totalorder %s14, 1
      %p112 = por %p110, %p111
      %p113 = scmp.ne.s32.totalorder %s105, %s108
      %p114 = scmp.eq.s32.totalorder %s14, 0
      %p115 = por %p113, %p114
      %p116 = scmp.ne.s32.totalorder %s105, %s108
      %p117 = scmp.eq.s32.totalorder %s19, 1
      %p118 = por %p116, %p117
      %p119 = scmp.ne.s32.totalorder %s108, %s109
      %p120 = scmp.eq.s32.totalorder %s19, 0
      %p121 = por %p119, %p120
      %p122 = scmp.ne.s32.totalorder %s108, %s109
      %p123 = scmp.eq.s32.totalorder %s20, 1
      %p124 = por %p122, %p123
      %p126 = scmp.ne.s32.totalorder %s109, %s125
      %p127 = scmp.eq.s32.totalorder %s20, 0
      %p128 = por %p126, %p127
      %p129 = scmp.le.s32.totalorder 1, %s14
      %p130 = scmp.lt.s32.totalorder %s14, 3
      %p131 = pnand %p129, %p130
      %p132 = pneg %p131
      // Predicated region
      $region9: #{tpu_custom_call.1} parent=5 // pred_check
        _
      $region10: #{tpu_custom_call.1} parent=5 // pred_check_branch
        %134 = sbr.rel (%p131) target = $region12
      $region11: #{tpu_custom_call.1} parent=5 // pred_region
        %s135 = ssub.s32 %s14, 1
      $region12: #{tpu_custom_call.1} parent=5 // pred_fallthru
        _
      %p136 = scmp.lt.s32.totalorder %s14, 2
      // Predicated region
      $region13: #{tpu_custom_call.1} parent=5 // pred_check
        %p137 = pneg %p136
      $region14: #{tpu_custom_call.1} parent=5 // pred_check_branch
        %139 = sbr.rel (%p137) target = $region16
      $region15: #{tpu_custom_call.1} parent=5 // pred_region
        // Predicated region
        $region17: #{tpu_custom_call.1} parent=15 // pred_check
          %p140 = pneg %p57
        $region18: #{tpu_custom_call.1} parent=15 // pred_check_branch
          %142 = sbr.rel (%p140) target = $region20
        $region19: #{tpu_custom_call.1} parent=15 // pred_region
          %s143 = sand.u32 %s47, 1
          %s144 = scalar_lea.sflag [#allocation7], %s143
          %s145 = sand.u32 %s47, 1
          %s146 = smul.addr %s145, 16
          %s147 = scalar_lea.vmem [#allocation6], %s146
          %s148 = smul.u32 2, %s22
          %s150 = ssub.s32 256, 256
          %151 = vsyncadd %s144, %s150
          %s152 = sadd.s32 %s23, %s148
          %s153 = smul.addr %s21, 2
          %s154 = sadd.s32 %s152, %s153
          %s155 = smul.addr %s154, 128
          %s156 = scalar_lea.hbm %s0, %s155
          %s157 = sshll.u32 %s147, 4
          %s158 = int_to_ptr.vmem [resolvable:$true] %s157
          %163 = dma.hbm_to_vmem [thread:$0]  %s156, 256, %s158, %s144, 128, 128, 8
        $region20: #{tpu_custom_call.1} parent=15 // pred_fallthru
          _
        // Predicated region
        $region21: #{tpu_custom_call.1} parent=15 // pred_check
          %p164 = pneg %p87
        $region22: #{tpu_custom_call.1} parent=15 // pred_check_branch
          %166 = sbr.rel (%p164) target = $region24
        $region23: #{tpu_custom_call.1} parent=15 // pred_region
          %s167 = sand.u32 %s77, 1
          %s168 = scalar_lea.sflag [#allocation9], %s167
          %s169 = sand.u32 %s77, 1
          %s170 = smul.addr %s169, 16
          %s171 = scalar_lea.vmem [#allocation8], %s170
          %s172 = smul.u32 2, %s22
          %s174 = ssub.s32 256, 256
          %175 = vsyncadd %s168, %s174
          %s176 = sadd.s32 %s23, %s172
          %s177 = smul.addr %s21, 2
          %s178 = sadd.s32 %s176, %s177
          %s179 = smul.addr %s178, 128
          %s180 = scalar_lea.hbm %s1, %s179
          %s181 = sshll.u32 %s171, 4
          %s182 = int_to_ptr.vmem [resolvable:$true] %s181
          %187 = dma.hbm_to_vmem [thread:$0]  %s180, 256, %s182, %s168, 128, 128, 8
        $region24: #{tpu_custom_call.1} parent=15 // pred_fallthru
          _
      $region16: #{tpu_custom_call.1} parent=5 // pred_fallthru
        _
      %p188 = scmp.le.s32.totalorder 1, %s14
      %p189 = scmp.lt.s32.totalorder %s14, 3
      %p190 = pnand %p188, %p189
      %p191 = pneg %p190
      // Predicated region
      $region25: #{tpu_custom_call.1} parent=5 // pred_check
        _
      $region26: #{tpu_custom_call.1} parent=5 // pred_check_branch
        %193 = sbr.rel (%p190) target = $region28
      $region27: #{tpu_custom_call.1} parent=5 // pred_region
        %s194 = ssub.s32 %s14, 1
        %s195 = sand.u32 %s50, 1
        %s196 = scalar_lea.sflag [#allocation7], %s195
        %s197 = sand.u32 %s50, 1
        %s198 = smul.addr %s197, 16
        %s199 = scalar_lea.vmem [#allocation6], %s198
        // Predicated region
        $region29: #{tpu_custom_call.1} parent=27 // pred_check
          %p200 = pneg %p63
        $region30: #{tpu_custom_call.1} parent=27 // pred_check_branch
          %202 = sbr.rel (%p200) target = $region32
        $region31: #{tpu_custom_call.1} parent=27 // pred_region
          %203 = dma.done %s196, 256
        $region32: #{tpu_custom_call.1} parent=27 // pred_fallthru
          _
        %s204 = sand.u32 %s80, 1
        %s205 = scalar_lea.sflag [#allocation9], %s204
        %s206 = sand.u32 %s80, 1
        %s207 = smul.addr %s206, 16
        %s208 = scalar_lea.vmem [#allocation8], %s207
        // Predicated region
        $region33: #{tpu_custom_call.1} parent=27 // pred_check
          %p209 = pneg %p93
        $region34: #{tpu_custom_call.1} parent=27 // pred_check_branch
          %211 = sbr.rel (%p209) target = $region36
        $region35: #{tpu_custom_call.1} parent=27 // pred_region
          %212 = dma.done %s205, 256
        $region36: #{tpu_custom_call.1} parent=27 // pred_fallthru
          _
        %s213 = sand.u32 %s50, 1
        %s214 = scalar_lea.sflag [#allocation7], %s213
        %s215 = sand.u32 %s50, 1
        %s216 = smul.addr %s215, 16
        %s217 = scalar_lea.vmem [#allocation6], %s216
        %p218 = pneg %p63
        %p219 = pneg %p60
        %s220 = sand.u32 %s80, 1
        %s221 = scalar_lea.sflag [#allocation9], %s220
        %s222 = sand.u32 %s80, 1
        %s223 = smul.addr %s222, 16
        %s224 = scalar_lea.vmem [#allocation8], %s223
        %p225 = pneg %p93
        %p226 = pneg %p90
        %p227 = pneg %p121
        %p228 = pneg %p118
        %s229 = smul.u32 2, %s25
        %p230 = scmp.lt.s32.totalorder %s24, 1
        %s231 = scalar_select %p230, %s24, 1
        %p232 = scmp.lt.s32.totalorder %s229, 1
        %s233 = scalar_select %p232, %s229, 1
        %s234 = smul.addr %s231, 2
        %s235 = sadd.s32 %s233, %s234
        %s236 = smul.addr %s235, 8
        %s237 = scalar_lea.vmem %s2, %s236
        %s238 = smul.u32 2, %s25
        %s239 = smul.u32 2, %s25
        %s240 = smul.u32 2, %s25
        %p241 = scmp.lt.s32.totalorder %s24, 1
        %s242 = scalar_select %p241, %s24, 1
        %p243 = scmp.lt.s32.totalorder %s240, 1
        %s244 = scalar_select %p243, %s240, 1
        %s245 = smul.addr %s242, 2
        %s246 = sadd.s32 %s244, %s245
        %s247 = smul.addr %s246, 8
        %s248 = scalar_lea.vmem %s2, %s247
        %s249 = smul.u32 2, %s25
        %p250 = scmp.eq.s32.totalorder %s26, 0
        // Predicated region
        $region37: #{tpu_custom_call.1} parent=27 // pred_check
          %p251 = pneg %p250
        $region38: #{tpu_custom_call.1} parent=27 // pred_check_branch
          %253 = sbr.rel (%p251) target = $region40
        $region39: #{tpu_custom_call.1} parent=27 // pred_region
          %vm254 = vcmask 7168
          %255 = vst.msk [vmem:[#allocation2] sm:$0xff] %vm254, -inf
          %256 = vst.msk [vmem:[#allocation2 + $0x8] sm:$0xff] %vm254, -inf
          %257 = vst.msk [vmem:[#allocation3] sm:$0xff] %vm254, 0.0
          %258 = vst.msk [vmem:[#allocation3 + $0x8] sm:$0xff] %vm254, 0.0
          %259 = vst.msk [vmem:[#allocation4] sm:$0xff] %vm254, 0.0
          %260 = vst.msk [vmem:[#allocation4 + $0x8] sm:$0xff] %vm254, 0.0
          %261 = vst.msk [vmem:[#allocation5] sm:$0xff] %vm254, 0.0
          %262 = vst.msk [vmem:[#allocation5 + $0x8] sm:$0xff] %vm254, 0.0
        $region40: #{tpu_custom_call.1} parent=27 // pred_fallthru
          _
        %v263 = vld [vmem:[%s199] sm:$0xff]
        %v264 = vld [vmem:[%s199 + $0x8] sm:$0xff]
        %v265 = vmul.f32 %v263, 10.0
        %v266 = vmul.f32 %v264, 10.0
        %v267 = vld [vmem:[%s208] sm:$0xff]
        %v268 = vld [vmem:[%s208 + $0x8] sm:$0xff]
        %vm269 = vcmask 261120
        %v270 = vsel %vm269, %v265, -inf
        %271 = vmax.xlane.f32.xlu0 %v270
        %v272 = vpop.xlane.xlu0 %271
        %v273 = vsel %vm269, %v266, -inf
        %274 = vmax.xlane.f32.xlu0 %v273
        %v275 = vpop.xlane.xlu0 %274
        %v276 = vld [vmem:[#allocation2] sm:$0xff]
        %v277 = vld [vmem:[#allocation2 + $0x8] sm:$0xff]
        %v278 = vmax.f32 %v276, %v272
        %v279 = vmax.f32 %v277, %v275
        %v280 = vsub.f32 %v276, %v278
        %v281 = vsub.f32 %v277, %v279
        %v282 = vmul.f32 %v280, 1.442695
        %v283 = vpow.pop %v282
        %v284 = vmul.f32 %v281, 1.442695
        %v285 = vpow.pop %v284
        %v286 = vld [vmem:[#allocation3] sm:$0xff]
        %v287 = vld [vmem:[#allocation3 + $0x8] sm:$0xff]
        %v288 = vmul.f32 %v283, %v286
        %v289 = vmul.f32 %v285, %v287
        %291 = vset.pattern.permute.xlu0 0
        %292 = vperm.xlu0 %291, %v278
        %v293 = vpop.permute.xlu0 %292
        %296 = vset.pattern.permute.xlu0 0
        %297 = vperm.xlu0 %296, %v279
        %v298 = vpop.permute.xlu0 %297
        %v300 = vsub.f32 %v265, %v293
        %v301 = vsub.f32 %v266, %v298
        %v302 = vmul.f32 %v300, 1.442695
        %v303 = vpow.pop %v302
        %v304 = vmul.f32 %v301, 1.442695
        %v305 = vpow.pop %v304
        %v306 = vsel %vm269, %v303, 0.0
        %307 = vadd.xlane.f32.xlu0 %v306
        %v308 = vpop.xlane.xlu0 %307
        %v309 = vsel %vm269, %v305, 0.0
        %310 = vadd.xlane.f32.xlu0 %v309
        %v311 = vpop.xlane.xlu0 %310
        %v312 = vadd.f32 %v288, %v308
        %v313 = vadd.f32 %v289, %v311
        %vm314 = vcmask 7168
        %315 = vst.msk [vmem:[#allocation3] sm:$0xff] %vm314, %v312
        %316 = vst.msk [vmem:[#allocation3 + $0x8] sm:$0xff] %vm314, %v313
        %317 = vst.msk [vmem:[#allocation2] sm:$0xff] %vm314, %v278
        %318 = vst.msk [vmem:[#allocation2 + $0x8] sm:$0xff] %vm314, %v279
        %v319 = vld [vmem:[#allocation4] sm:$0xff]
        %v320 = vld [vmem:[#allocation4 + $0x8] sm:$0xff]
        %v321 = vmul.f32 %v267, %v265
        %v322 = vmul.f32 %v268, %v266
        %v323 = vsel %vm269, %v321, 0.0
        %324 = vadd.xlane.f32.xlu0 %v323
        %v325 = vpop.xlane.xlu0 %324
        %v326 = vsel %vm269, %v322, 0.0
        %327 = vadd.xlane.f32.xlu0 %v326
        %v328 = vpop.xlane.xlu0 %327
        %v329 = vadd.f32 %v319, %v325
        %v330 = vadd.f32 %v320, %v328
        %331 = vst.msk [vmem:[#allocation4] sm:$0xff] %vm314, %v329
        %332 = vst.msk [vmem:[#allocation4 + $0x8] sm:$0xff] %vm314, %v330
        %v333 = vld [vmem:[#allocation5] sm:$0xff]
        %v334 = vld [vmem:[#allocation5 + $0x8] sm:$0xff]
        %v335 = vsel %vm269, %v267, 0.0
        %336 = vadd.xlane.f32.xlu0 %v335
        %v337 = vpop.xlane.xlu0 %336
        %v338 = vsel %vm269, %v268, 0.0
        %339 = vadd.xlane.f32.xlu0 %v338
        %v340 = vpop.xlane.xlu0 %339
        %v341 = vadd.f32 %v333, %v337
        %v342 = vadd.f32 %v334, %v340
        %343 = vst.msk [vmem:[#allocation5] sm:$0xff] %vm314, %v341
        %344 = vst.msk [vmem:[#allocation5 + $0x8] sm:$0xff] %vm314, %v342
        // Predicated region
        $region41: #{tpu_custom_call.1} parent=27 // pred_check
          %p345 = pneg %p250
        $region42: #{tpu_custom_call.1} parent=27 // pred_check_branch
          %347 = sbr.rel (%p345) target = $region44
        $region43: #{tpu_custom_call.1} parent=27 // pred_region
          %v348 = vld [vmem:[#allocation2] sm:$0xff]
          %v349 = vld [vmem:[#allocation2 + $0x8] sm:$0xff]
          %v350 = vld [vmem:[#allocation3] sm:$0xff]
          %v351 = vld [vmem:[#allocation3 + $0x8] sm:$0xff]
          %v352 = vlog2.pop %v350
          %v353 = vmul.f32 %v352, 0.6931472
          %v354 = vlog2.pop %v351
          %v355 = vmul.f32 %v354, 0.6931472
          %v356 = vadd.f32 %v348, %v353
          %v357 = vadd.f32 %v349, %v355
          %v358 = vld [vmem:[#allocation4] sm:$0xff]
          %v359 = vld [vmem:[#allocation4 + $0x8] sm:$0xff]
          %v360 = vld [vmem:[#allocation5] sm:$0xff]
          %v361 = vld [vmem:[#allocation5 + $0x8] sm:$0xff]
          %v362 = vmul.f32 %v356, %v360
          %v363 = vmul.f32 %v357, %v361
          %v364 = vsub.f32 %v358, %v362
          %v365 = vsub.f32 %v359, %v363
          %366 = vst.msk [vmem:[%s248] sm:$0xff] %vm314, %v364
          %367 = vst.msk [vmem:[%s248 + $0x8] sm:$0xff] %vm314, %v365
        $region44: #{tpu_custom_call.1} parent=27 // pred_fallthru
          _
        %s368 = smul.u32 2, %s25
        %p369 = scmp.lt.s32.totalorder %s24, 1
        %s370 = scalar_select %p369, %s24, 1
        %p371 = scmp.lt.s32.totalorder %s368, 1
        %s372 = scalar_select %p371, %s368, 1
        %s373 = smul.addr %s370, 2
        %s374 = sadd.s32 %s372, %s373
        %s375 = smul.addr %s374, 8
        %s376 = scalar_lea.vmem %s2, %s375
        // Predicated region
        $region45: #{tpu_custom_call.1} parent=27 // pred_check
          %p377 = pneg %p118
        $region46: #{tpu_custom_call.1} parent=27 // pred_check_branch
          %379 = sbr.rel (%p377) target = $region48
        $region47: #{tpu_custom_call.1} parent=27 // pred_region
          %s380 = smul.u32 2, %s25
        $region48: #{tpu_custom_call.1} parent=27 // pred_fallthru
          _
      $region28: #{tpu_custom_call.1} parent=5 // pred_fallthru
        _
      %p381 = scmp.le.s32.totalorder 2, %s14
      // Predicated region
      $region49: #{tpu_custom_call.1} parent=5 // pred_check
        %p382 = pneg %p381
      $region50: #{tpu_custom_call.1} parent=5 // pred_check_branch
        %384 = sbr.rel (%p382) target = $region52
      $region51: #{tpu_custom_call.1} parent=5 // pred_region
        %s385 = ssub.s32 %s14, 2
        // Predicated region
        $region53: #{tpu_custom_call.1} parent=51 // pred_check
          %p386 = pneg %p124
        $region54: #{tpu_custom_call.1} parent=51 // pred_check_branch
          %388 = sbr.rel (%p386) target = $region56
        $region55: #{tpu_custom_call.1} parent=51 // pred_region
          %s389 = smul.u32 2, %s28
          %p390 = scmp.lt.s32.totalorder %s27, 1
          %s391 = scalar_select %p390, %s27, 1
          %p392 = scmp.lt.s32.totalorder %s389, 1
          %s393 = scalar_select %p392, %s389, 1
          %s394 = smul.addr %s391, 2
          %s395 = sadd.s32 %s393, %s394
          %s396 = smul.addr %s395, 8
          %s397 = scalar_lea.vmem %s2, %s396
        $region56: #{tpu_custom_call.1} parent=51 // pred_fallthru
          _
      $region52: #{tpu_custom_call.1} parent=5 // pred_fallthru
        _
    $region6: #{tpu_custom_call.1} parent=1 // loop_footer
      %s18 = sadd.s32 1, %s14
    $region7: #{tpu_custom_call.1} parent=1 // loop_footer_branch
      %13 = sbr.rel target = $region3
    $region8: #{tpu_custom_call.1} parent=1 // loop_exit
      _
    %398 = vsyncpa [#allocation7], 1
    %s399 = scalar_lea.sflag [#allocation7], 1
    %400 = vsyncpa %s399, 1
    %401 = vsyncpa [#allocation9], 1
    %s402 = scalar_lea.sflag [#allocation9], 1
    %403 = vsyncpa %s402, 1

</llo_original>
